<compile_context>
chip_gen: v7x
topology: tpu7x:2x2x1
jax: 0.10.0
libtpu: 0.0.40
codegen_flags: <defaults>
</compile_context>

<pallas_src>
import functools

import jax
import jax.numpy as jnp
from jax.experimental import pallas as pl
from jax.experimental.pallas import tpu as pltpu

NUM_CLASSES = 4     # params.num_classes
INPUT_SIZE = 16     # params.input_size (heatmap spatial size)


def _pb_mse_kernel(pred_ref, tgt_ref, img_size_ref, mm_ref, mse_ref, *, s, square):
    # pred_ref     : (1, C, S*S) f32 VMEM  -- this sample's heatmaps, lane-dense
    # tgt_ref      : (1, C, 2)   f32 VMEM  -- target landmarks (x, y) in image pixels
    # img_size_ref : (B, 2)      f32 SMEM  -- per-sample original image (width, height)
    # mm_ref       : (B, 2)      f32 SMEM  -- per-sample mm-per-pixel scale (x, y)
    # mse_ref      : (1, 1, 1)   f32 VMEM  -- this sample's MSE (or RMSE)
    b = pl.program_id(0)
    C = pred_ref.shape[1]
    SS = pred_ref.shape[2]
    shift = s.bit_length() - 1          # log2(S), static

    p2 = pred_ref[0]                                          # (C, S*S), no reshape

    # First-occurrence argmax: max value, then min flat index among maxima.
    maxv = jnp.max(p2, axis=1, keepdims=True)                 # (C, 1)
    flat = jax.lax.broadcasted_iota(jnp.int32, (C, SS), 1)
    masked = jnp.where(p2 == maxv, flat, jnp.int32(SS))
    idx = jnp.min(masked, axis=1, keepdims=True)              # (C, 1) int32

    row = (idx >> shift).astype(jnp.float32)                  # y in heatmap pixels
    col = (idx & (s - 1)).astype(jnp.float32)                 # x in heatmap pixels

    # Scalar math on SMEM values (sregs) -- folded rescale chain.
    mm_x = mm_ref[b, 0]
    mm_y = mm_ref[b, 1]
    inv_s = jnp.float32(1.0 / s)
    sx = img_size_ref[b, 0] * mm_x * inv_s                    # px->img px->mm, x
    sy = img_size_ref[b, 1] * mm_y * inv_s                    # px->img px->mm, y

    # Prediction: heatmap pixels -> mm (single broadcast multiply per axis).
    px = col * sx                                             # (C, 1)
    py = row * sy

    # Targets: original-image pixels -> mm.
    tgt = tgt_ref[0]                                          # (C, 2)
    tx = tgt[:, 0:1] * mm_x
    ty = tgt[:, 1:2] * mm_y

    # mean_squared_error over the (C, 2) landmark matrix.
    err = (px - tx) ** 2 + (py - ty) ** 2                     # (C, 1)
    mse = jnp.sum(err, axis=0, keepdims=True) * jnp.float32(1.0 / (2.0 * C))  # (1, 1)
    if not square:                                            # sklearn squared=False -> RMSE
        mse = jnp.sqrt(mse)
    mse_ref[0] = mse


@functools.partial(jax.jit, static_argnames=("square",))
def pb_mse_metric(prediction, lm_targets_px, img_size, mm_per_px, square=True):
    """Batched version: one MSE (or RMSE) per sample.

    prediction    : (B, C, S, S) f32 heatmaps
    lm_targets_px : (B, C, 2)    f32 target landmarks in original-image pixels (x, y)
    img_size      : (B, 2)       f32 original image (width, height)
    mm_per_px     : (B, 2)       f32 mm-per-pixel scale (x, y)
    returns       : (B,)         f32
    """
    B, C, S, S2 = prediction.shape
    assert S == S2 and (S & (S - 1)) == 0, "input_size must be a power of two"

    # Wrapper-side flatten: free layout plumbing, gives the kernel lane-dense
    # (C, S*S) tiles instead of an in-kernel relayout of (C, S, S).
    pred_flat = prediction.reshape(B, C, S * S)

    kernel = functools.partial(_pb_mse_kernel, s=S, square=square)
    out = pl.pallas_call(
        kernel,
        grid=(B,),
        out_shape=jax.ShapeDtypeStruct((B, 1, 1), jnp.float32),
        in_specs=[
            pl.BlockSpec((1, C, S * S), lambda b: (b, 0, 0)),            # heatmaps
            pl.BlockSpec((1, C, 2), lambda b: (b, 0, 0)),                # targets (px)
            pl.BlockSpec(memory_space=pltpu.MemorySpace.SMEM),           # image sizes
            pl.BlockSpec(memory_space=pltpu.MemorySpace.SMEM),           # mm-per-pixel
        ],
        out_specs=pl.BlockSpec((1, 1, 1), lambda b: (b, 0, 0)),
        compiler_params=pltpu.CompilerParams(
            dimension_semantics=("parallel",)),
    )(pred_flat, lm_targets_px, img_size, mm_per_px)
    return out.reshape(B)


def _reference(prediction, lm_targets_px, img_size, mm_per_px, square=True):
    """Pure-JAX reference mirroring the PyTorch/numpy math."""
    B, C, S, _ = prediction.shape
    p2 = prediction.reshape(B, C, S * S)
    idx = jnp.argmax(p2, axis=-1)                             # first occurrence
    row = (idx // S).astype(jnp.float32)
    col = (idx % S).astype(jnp.float32)
    px = col * img_size[:, None, 0] / S * mm_per_px[:, None, 0]
    py = row * img_size[:, None, 1] / S * mm_per_px[:, None, 1]
    tx = lm_targets_px[..., 0] * mm_per_px[:, None, 0]
    ty = lm_targets_px[..., 1] * mm_per_px[:, None, 1]
    mse = ((px - tx) ** 2 + (py - ty) ** 2).sum(axis=-1) / (2.0 * C)
    return mse if square else jnp.sqrt(mse)


if __name__ == "__main__":
    import numpy as np

    B = 2
    key = jax.random.PRNGKey(0)
    k1, k2 = jax.random.split(key)

    # predicted heatmaps: (batch, num_classes, input_size, input_size)
    prediction = jax.random.normal(
        k1, (B, NUM_CLASSES, INPUT_SIZE, INPUT_SIZE), jnp.float32)

    # per-sample target landmarks in original-image pixel coordinates (x, y)
    lm_targets_px = jax.random.uniform(
        k2, (B, NUM_CLASSES, 2), jnp.float32, minval=0.0, maxval=20.0)

    # per-sample original image (width, height) and pixel->mm scale
    img_size = jnp.tile(jnp.array([[20.0, 24.0]], jnp.float32), (B, 1))
    mm_per_px = jnp.tile(jnp.array([[0.5, 0.5]], jnp.float32), (B, 1))

    mse = pb_mse_metric(prediction, lm_targets_px, img_size, mm_per_px, square=True)
    jax.block_until_ready(mse)

    ref = _reference(prediction, lm_targets_px, img_size, mm_per_px, square=True)
    np.testing.assert_allclose(np.asarray(mse), np.asarray(ref), rtol=1e-5, atol=1e-5)

    print("KERNEL_OK")
</pallas_src>

<mosaic_0001>
module attributes {stable_mosaic.version = 11 : i64} {
  func.func @_pb_mse_kernel(%arg0: i32, %arg1: memref<1x4x256xf32, #tpu.memory_space<vmem>>, %arg2: memref<1x4x2xf32, #tpu.memory_space<vmem>>, %arg3: memref<2x2xf32, #tpu.memory_space<smem>>, %arg4: memref<2x2xf32, #tpu.memory_space<smem>>, %arg5: memref<1x1x1xf32, #tpu.memory_space<vmem>>) attributes {dimension_semantics = [#tpu.dimension_semantics<parallel>], iteration_bounds = array<i64: 2>, scalar_prefetch = 0 : i64, scratch_operands = 0 : i64, tpu.core_type = #tpu.core_type<tc>, window_params = [{transform_indices = @transform_0, window_bounds = array<i64: 1, 4, 256>}, {transform_indices = @transform_1, window_bounds = array<i64: 1, 4, 2>}, {transform_indices = @transform_2, window_bounds = array<i64: 2, 2>}, {transform_indices = @transform_3, window_bounds = array<i64: 2, 2>}, {transform_indices = @transform_4, window_bounds = array<i64: 1, 1, 1>}]} {
    %c0 = arith.constant 0 : index
    %c0_0 = arith.constant 0 : index
    %c0_1 = arith.constant 0 : index
    %0 = vector.load %arg1[%c0, %c0_0, %c0_1] : memref<1x4x256xf32, #tpu.memory_space<vmem>>, vector<1x4x256xf32>
    %1 = vector.shape_cast %0 : vector<1x4x256xf32> to vector<4x256xf32>
    %cst = arith.constant dense<0xFF800000> : vector<4xf32>
    %2 = vector.multi_reduction <maximumf>, %1, %cst [1] : vector<4x256xf32> to vector<4xf32>
    %3 = vector.shape_cast %2 : vector<4xf32> to vector<4x1xf32>
    %4 = tpu.iota {dimensions = array<i32: 1>} : vector<4x256xi32>
    %5 = vector.broadcast %3 : vector<4x1xf32> to vector<4x256xf32>
    %6 = arith.cmpf oeq, %1, %5 : vector<4x256xf32>
    %c256_i32 = arith.constant 256 : i32
    %7 = vector.broadcast %c256_i32 : i32 to vector<4x256xi32>
    %8 = arith.select %6, %4, %7 : vector<4x256xi1>, vector<4x256xi32>
    %cst_2 = arith.constant dense<2147483647> : vector<4xi32>
    %9 = vector.multi_reduction <minsi>, %8, %cst_2 [1] : vector<4x256xi32> to vector<4xi32>
    %10 = vector.shape_cast %9 : vector<4xi32> to vector<4x1xi32>
    %c4_i32 = arith.constant 4 : i32
    %11 = vector.broadcast %c4_i32 : i32 to vector<4x1xi32>
    %12 = arith.shrsi %10, %11 : vector<4x1xi32>
    %13 = arith.sitofp %12 : vector<4x1xi32> to vector<4x1xf32>
    %c15_i32 = arith.constant 15 : i32
    %14 = vector.broadcast %c15_i32 : i32 to vector<4x1xi32>
    %15 = arith.andi %10, %14 : vector<4x1xi32>
    %16 = arith.sitofp %15 : vector<4x1xi32> to vector<4x1xf32>
    %17 = arith.index_cast %arg0 : i32 to index
    %c0_3 = arith.constant 0 : index
    %18 = memref.load %arg4[%17, %c0_3] : memref<2x2xf32, #tpu.memory_space<smem>>
    %19 = arith.index_cast %arg0 : i32 to index
    %c1 = arith.constant 1 : index
    %20 = memref.load %arg4[%19, %c1] : memref<2x2xf32, #tpu.memory_space<smem>>
    %21 = arith.index_cast %arg0 : i32 to index
    %c0_4 = arith.constant 0 : index
    %22 = memref.load %arg3[%21, %c0_4] : memref<2x2xf32, #tpu.memory_space<smem>>
    %23 = arith.mulf %22, %18 : f32
    %cst_5 = arith.constant 6.250000e-02 : f32
    %24 = arith.mulf %23, %cst_5 : f32
    %25 = arith.index_cast %arg0 : i32 to index
    %c1_6 = arith.constant 1 : index
    %26 = memref.load %arg3[%25, %c1_6] : memref<2x2xf32, #tpu.memory_space<smem>>
    %27 = arith.mulf %26, %20 : f32
    %cst_7 = arith.constant 6.250000e-02 : f32
    %28 = arith.mulf %27, %cst_7 : f32
    %29 = vector.broadcast %24 : f32 to vector<4x1xf32>
    %30 = arith.mulf %16, %29 : vector<4x1xf32>
    %31 = vector.broadcast %28 : f32 to vector<4x1xf32>
    %32 = arith.mulf %13, %31 : vector<4x1xf32>
    %c0_8 = arith.constant 0 : index
    %c0_9 = arith.constant 0 : index
    %c0_10 = arith.constant 0 : index
    %33 = vector.load %arg2[%c0_8, %c0_9, %c0_10] : memref<1x4x2xf32, #tpu.memory_space<vmem>>, vector<1x4x2xf32>
    %34 = vector.shape_cast %33 : vector<1x4x2xf32> to vector<4x2xf32>
    %35 = vector.extract_strided_slice %34 {offsets = [0, 0], sizes = [4, 1], strides = [1, 1]} : vector<4x2xf32> to vector<4x1xf32>
    %36 = vector.broadcast %18 : f32 to vector<4x1xf32>
    %37 = arith.mulf %35, %36 : vector<4x1xf32>
    %38 = vector.extract_strided_slice %34 {offsets = [0, 1], sizes = [4, 1], strides = [1, 1]} : vector<4x2xf32> to vector<4x1xf32>
    %39 = vector.broadcast %20 : f32 to vector<4x1xf32>
    %40 = arith.mulf %38, %39 : vector<4x1xf32>
    %41 = arith.subf %30, %37 : vector<4x1xf32>
    %42 = arith.mulf %41, %41 : vector<4x1xf32>
    %43 = arith.subf %32, %40 : vector<4x1xf32>
    %44 = arith.mulf %43, %43 : vector<4x1xf32>
    %45 = arith.addf %42, %44 : vector<4x1xf32>
    %cst_11 = arith.constant dense<0.000000e+00> : vector<1xf32>
    %46 = vector.multi_reduction <add>, %45, %cst_11 [0] : vector<4x1xf32> to vector<1xf32>
    %47 = vector.shape_cast %46 : vector<1xf32> to vector<1x1xf32>
    %cst_12 = arith.constant 1.250000e-01 : f32
    %48 = vector.broadcast %cst_12 : f32 to vector<1x1xf32>
    %49 = arith.mulf %47, %48 : vector<1x1xf32>
    %c0_13 = arith.constant 0 : index
    %c0_14 = arith.constant 0 : index
    %c0_15 = arith.constant 0 : index
    %50 = vector.load %arg5[%c0_13, %c0_14, %c0_15] : memref<1x1x1xf32, #tpu.memory_space<vmem>>, vector<1x1x1xf32>
    %51 = vector.shape_cast %50 : vector<1x1x1xf32> to vector<1x1xf32>
    %52 = vector.shape_cast %49 : vector<1x1xf32> to vector<1x1x1xf32>
    tpu.vector_store %arg5[%c0_13, %c0_14, %c0_15], %52 {strides = array<i32>} : memref<1x1x1xf32, #tpu.memory_space<vmem>>, vector<1x1x1xf32>,
    return
  }
  func.func @transform_0(%arg0: i32) -> (i32, i32, i32) {
    %c0_i32 = arith.constant 0 : i32
    %c0_i32_0 = arith.constant 0 : i32
    %c0_i32_1 = arith.constant 0 : i32
    return %arg0, %c0_i32, %c0_i32_0 : i32, i32, i32
  }
  func.func @transform_1(%arg0: i32) -> (i32, i32, i32) {
    %c0_i32 = arith.constant 0 : i32
    %c0_i32_0 = arith.constant 0 : i32
    %c0_i32_1 = arith.constant 0 : i32
    return %arg0, %c0_i32, %c0_i32_0 : i32, i32, i32
  }
  func.func @transform_2(%arg0: i32) -> (i32, i32) {
    %c0_i32 = arith.constant 0 : i32
    %c0_i32_0 = arith.constant 0 : i32
    %c0_i32_1 = arith.constant 0 : i32
    return %c0_i32, %c0_i32_0 : i32, i32
  }
  func.func @transform_3(%arg0: i32) -> (i32, i32) {
    %c0_i32 = arith.constant 0 : i32
    %c0_i32_0 = arith.constant 0 : i32
    %c0_i32_1 = arith.constant 0 : i32
    return %c0_i32, %c0_i32_0 : i32, i32
  }
  func.func @transform_4(%arg0: i32) -> (i32, i32, i32) {
    %c0_i32 = arith.constant 0 : i32
    %c0_i32_0 = arith.constant 0 : i32
    %c0_i32_1 = arith.constant 0 : i32
    return %arg0, %c0_i32, %c0_i32_0 : i32, i32, i32
  }
}

</mosaic_0001>

<llo_original>
// kernel: pb_mse_metric.1
$region0: #{pb_mse_metric.1}
  #allocation0 [shape = 'u32[]', space=smem, size = 0x4, offset = 0x4, fixed_abs, tag = 'smem constant byte address 0x4 - core index']
  #allocation1 [shape = 'u32[144,128]{1,0:T(1,128)}', space=vmem, size = 0x12000, scoped, tag = 'internal scratch']
  %s0 = inlined_call_operand.vmem [shape: f32[2,4,256], index: 0, kind: input, shape index: {}]
  %s1 = inlined_call_operand.vmem [shape: f32[2,4,2], index: 1, kind: input, shape index: {}]
  %s2 = inlined_call_operand.vmem [shape: f32[2,2], index: 2, kind: input, shape index: {}]
  %s3 = inlined_call_operand.vmem [shape: f32[2,2], index: 3, kind: input, shape index: {}]
  %s4 = inlined_call_operand.vmem [shape: f32[2,1,1], index: 4, kind: output, shape index: {}]
  %s5 = sld [smem:[#allocation0]]
  $region57: #{pb_mse_metric.1} parent=0
    _
  %s7 = ssub.s32 1, %s5
  %s8 = scalar_select 0, %s7, %s5
  $region1: #{pb_mse_metric.1} parent=0
    #allocation2 [shape = 'u8[1024]{0}', space=smem, size = 0x400, scoped, tag = 'input window, operand 2, single buffered']
    #allocation3 [shape = 's32[2]{0}', space=sflag, size = 0x8, scoped, tag = 'scoped memory for pb_mse_metric.1']
    #allocation4 [shape = 'u8[1024]{0}', space=smem, size = 0x400, scoped, tag = 'input window, operand 3, single buffered']
    #allocation5 [shape = 's32[1]{0}', space=sflag, size = 0x4, scoped, tag = 'scoped memory for pb_mse_metric.1']
    %9 = vsyncpa [#allocation3], 0
    %10 = vsyncpa [#allocation5], 0
    loop: start=0, step=1, limit=4
    $region2: #{pb_mse_metric.1} parent=1 // loop_pre_header
      _
    $region3: #{pb_mse_metric.1} parent=1 // loop_header
      %s12 = sphi 0, %s16
      %p13 = scmp.ge.s32.totalorder %s12, 4
      %s22 = sphi 0, %s24
      %s25 = sphi 0, %s22
      %s26 = sphi 0, %s25
      %s42 = sphi 0, %s26
      %s48 = sphi 0, %s50
      %s51 = sphi 0, %s48
      %s52 = sphi 0, %s51
      %s68 = sphi 0, %s52
      %s72 = sphi 0, %s72
      %s74 = sphi 0, %s72
      %s75 = sphi 0, %s74
      %s89 = sphi 0, %s75
      %s93 = sphi 0, %s93
      %s95 = sphi 0, %s93
      %s96 = sphi 0, %s95
      %s110 = sphi 0, %s96
      %s116 = sphi 0, %s118
      %s119 = sphi 0, %s116
      %s120 = sphi 0, %s119
      %s136 = sphi 0, %s120
    $region4: #{pb_mse_metric.1} parent=1 // loop_header_branch
      %15 = sbr.rel (%p13) target = $region8
    $region5: #{pb_mse_metric.1} parent=1 // loop_body
      %s17 = ssub.s32 %s12, 1
      %s18 = ssub.s32 %s12, 2
      %s19 = sadd.s32 %s12, 1
      %s20 = ssub.s32 %s12, %s19
      %p21 = scmp.eq.s32.totalorder %s20, 0
      %s23 = sadd.s32 %s22, 1
      %s24 = scalar_select %p21, %s22, %s23
      %p27 = pneg %p21
      %p28 = scmp.eq.s32.totalorder %s12, 1
      %p29 = por %p27, %p28
      %p30 = scmp.ne.s32.totalorder %s22, %s25
      %p31 = scmp.eq.s32.totalorder %s12, 0
      %p32 = por %p30, %p31
      %p33 = scmp.ne.s32.totalorder %s22, %s25
      %p34 = scmp.eq.s32.totalorder %s17, 1
      %p35 = por %p33, %p34
      %p36 = scmp.ne.s32.totalorder %s25, %s26
      %p37 = scmp.eq.s32.totalorder %s17, 0
      %p38 = por %p36, %p37
      %p39 = scmp.ne.s32.totalorder %s25, %s26
      %p40 = scmp.eq.s32.totalorder %s18, 1
      %p41 = por %p39, %p40
      %p43 = scmp.ne.s32.totalorder %s26, %s42
      %p44 = scmp.eq.s32.totalorder %s18, 0
      %p45 = por %p43, %p44
      %s46 = ssub.s32 %s12, %s19
      %p47 = scmp.eq.s32.totalorder %s46, 0
      %s49 = sadd.s32 %s48, 1
      %s50 = scalar_select %p47, %s48, %s49
      %p53 = pneg %p47
      %p54 = scmp.eq.s32.totalorder %s12, 1
      %p55 = por %p53, %p54
      %p56 = scmp.ne.s32.totalorder %s48, %s51
      %p57 = scmp.eq.s32.totalorder %s12, 0
      %p58 = por %p56, %p57
      %p59 = scmp.ne.s32.totalorder %s48, %s51
      %p60 = scmp.eq.s32.totalorder %s17, 1
      %p61 = por %p59, %p60
      %p62 = scmp.ne.s32.totalorder %s51, %s52
      %p63 = scmp.eq.s32.totalorder %s17, 0
      %p64 = por %p62, %p63
      %p65 = scmp.ne.s32.totalorder %s51, %s52
      %p66 = scmp.eq.s32.totalorder %s18, 1
      %p67 = por %p65, %p66
      %p69 = scmp.ne.s32.totalorder %s52, %s68
      %p70 = scmp.eq.s32.totalorder %s18, 0
      %p71 = por %p69, %p70
      %s73 = sadd.s32 %s72, 1
      %p76 = scmp.eq.s32.totalorder %s12, 1
      %p77 = scmp.ne.s32.totalorder %s72, %s74
      %p78 = scmp.eq.s32.totalorder %s12, 0
      %p79 = por %p77, %p78
      %p80 = scmp.ne.s32.totalorder %s72, %s74
      %p81 = scmp.eq.s32.totalorder %s17, 1
      %p82 = por %p80, %p81
      %p83 = scmp.ne.s32.totalorder %s74, %s75
      %p84 = scmp.eq.s32.totalorder %s17, 0
      %p85 = por %p83, %p84
      %p86 = scmp.ne.s32.totalorder %s74, %s75
      %p87 = scmp.eq.s32.totalorder %s18, 1
      %p88 = por %p86, %p87
      %p90 = scmp.ne.s32.totalorder %s75, %s89
      %p91 = scmp.eq.s32.totalorder %s18, 0
      %p92 = por %p90, %p91
      %s94 = sadd.s32 %s93, 1
      %p97 = scmp.eq.s32.totalorder %s12, 1
      %p98 = scmp.ne.s32.totalorder %s93, %s95
      %p99 = scmp.eq.s32.totalorder %s12, 0
      %p100 = por %p98, %p99
      %p101 = scmp.ne.s32.totalorder %s93, %s95
      %p102 = scmp.eq.s32.totalorder %s17, 1
      %p103 = por %p101, %p102
      %p104 = scmp.ne.s32.totalorder %s95, %s96
      %p105 = scmp.eq.s32.totalorder %s17, 0
      %p106 = por %p104, %p105
      %p107 = scmp.ne.s32.totalorder %s95, %s96
      %p108 = scmp.eq.s32.totalorder %s18, 1
      %p109 = por %p107, %p108
      %p111 = scmp.ne.s32.totalorder %s96, %s110
      %p112 = scmp.eq.s32.totalorder %s18, 0
      %p113 = por %p111, %p112
      %s114 = ssub.s32 %s12, %s19
      %p115 = scmp.eq.s32.totalorder %s114, 0
      %s117 = sadd.s32 %s116, 1
      %s118 = scalar_select %p115, %s116, %s117
      %p121 = pneg %p115
      %p122 = scmp.eq.s32.totalorder %s12, 1
      %p123 = por %p121, %p122
      %p124 = scmp.ne.s32.totalorder %s116, %s119
      %p125 = scmp.eq.s32.totalorder %s12, 0
      %p126 = por %p124, %p125
      %p127 = scmp.ne.s32.totalorder %s116, %s119
      %p128 = scmp.eq.s32.totalorder %s17, 1
      %p129 = por %p127, %p128
      %p130 = scmp.ne.s32.totalorder %s119, %s120
      %p131 = scmp.eq.s32.totalorder %s17, 0
      %p132 = por %p130, %p131
      %p133 = scmp.ne.s32.totalorder %s119, %s120
      %p134 = scmp.eq.s32.totalorder %s18, 1
      %p135 = por %p133, %p134
      %p137 = scmp.ne.s32.totalorder %s120, %s136
      %p138 = scmp.eq.s32.totalorder %s18, 0
      %p139 = por %p137, %p138
      %p140 = scmp.le.s32.totalorder 1, %s12
      %p141 = scmp.lt.s32.totalorder %s12, 3
      %p142 = pnand %p140, %p141
      %p143 = pneg %p142
      // Predicated region
      $region9: #{pb_mse_metric.1} parent=5 // pred_check
        _
      $region10: #{pb_mse_metric.1} parent=5 // pred_check_branch
        %145 = sbr.rel (%p142) target = $region12
      $region11: #{pb_mse_metric.1} parent=5 // pred_region
        %s146 = ssub.s32 %s12, 1
        // Predicated region
        $region13: #{pb_mse_metric.1} parent=11 // pred_check
          %p147 = pneg %p85
        $region14: #{pb_mse_metric.1} parent=11 // pred_check_branch
          %149 = sbr.rel (%p147) target = $region16
        $region15: #{pb_mse_metric.1} parent=11 // pred_region
          %s151 = ssub.s32 32, 32
          %152 = vsyncadd [#allocation3], %s151
          %s154 = sshll.u32 %s2, 4
          %s155 = int_to_ptr.vmem [resolvable:$true] %s154
          %157 = dma.vmem_to_smem %s155, 32, [#allocation2], [#allocation3]
        $region16: #{pb_mse_metric.1} parent=11 // pred_fallthru
          _
        // Predicated region
        $region17: #{pb_mse_metric.1} parent=11 // pred_check
          %p158 = pneg %p106
        $region18: #{pb_mse_metric.1} parent=11 // pred_check_branch
          %160 = sbr.rel (%p158) target = $region20
        $region19: #{pb_mse_metric.1} parent=11 // pred_region
          %s162 = ssub.s32 32, 32
          %163 = vsyncadd [#allocation5], %s162
          %s165 = sshll.u32 %s3, 4
          %s166 = int_to_ptr.vmem [resolvable:$true] %s165
          %168 = dma.vmem_to_smem %s166, 32, [#allocation4], [#allocation5]
        $region20: #{pb_mse_metric.1} parent=11 // pred_fallthru
          _
      $region12: #{pb_mse_metric.1} parent=5 // pred_fallthru
        _
      %p169 = scmp.lt.s32.totalorder %s12, 2
      // Predicated region
      $region21: #{pb_mse_metric.1} parent=5 // pred_check
        %p170 = pneg %p169
      $region22: #{pb_mse_metric.1} parent=5 // pred_check_branch
        %172 = sbr.rel (%p170) target = $region24
      $region23: #{pb_mse_metric.1} parent=5 // pred_region
        // Predicated region
        $region25: #{pb_mse_metric.1} parent=23 // pred_check
          %p173 = pneg %p32
        $region26: #{pb_mse_metric.1} parent=23 // pred_check_branch
          %175 = sbr.rel (%p173) target = $region28
        $region27: #{pb_mse_metric.1} parent=23 // pred_region
          %p176 = scmp.lt.s32.totalorder %s12, 1
          %s177 = scalar_select %p176, %s12, 1
          %s178 = smul.addr %s177, 2
          %s179 = smul.addr %s178, 4
          %s180 = scalar_lea.vmem %s0, %s179
        $region28: #{pb_mse_metric.1} parent=23 // pred_fallthru
          _
        // Predicated region
        $region29: #{pb_mse_metric.1} parent=23 // pred_check
          %p181 = pneg %p58
        $region30: #{pb_mse_metric.1} parent=23 // pred_check_branch
          %183 = sbr.rel (%p181) target = $region32
        $region31: #{pb_mse_metric.1} parent=23 // pred_region
          %p184 = scmp.lt.s32.totalorder %s12, 1
          %s185 = scalar_select %p184, %s12, 1
          %s186 = smul.addr %s185, 4
          %s187 = scalar_lea.vmem %s1, %s186
        $region32: #{pb_mse_metric.1} parent=23 // pred_fallthru
          _
      $region24: #{pb_mse_metric.1} parent=5 // pred_fallthru
        _
      %p188 = scmp.le.s32.totalorder 1, %s12
      %p189 = scmp.lt.s32.totalorder %s12, 3
      %p190 = pnand %p188, %p189
      %p191 = pneg %p190
      // Predicated region
      $region33: #{pb_mse_metric.1} parent=5 // pred_check
        _
      $region34: #{pb_mse_metric.1} parent=5 // pred_check_branch
        %193 = sbr.rel (%p190) target = $region36
      $region35: #{pb_mse_metric.1} parent=5 // pred_region
        %s194 = ssub.s32 %s12, 1
        // Predicated region
        $region37: #{pb_mse_metric.1} parent=35 // pred_check
          %p195 = pneg %p85
        $region38: #{pb_mse_metric.1} parent=35 // pred_check_branch
          %197 = sbr.rel (%p195) target = $region40
        $region39: #{pb_mse_metric.1} parent=35 // pred_region
          %198 = dma.done [#allocation3], 32
        $region40: #{pb_mse_metric.1} parent=35 // pred_fallthru
          _
        // Predicated region
        $region41: #{pb_mse_metric.1} parent=35 // pred_check
          %p199 = pneg %p106
        $region42: #{pb_mse_metric.1} parent=35 // pred_check_branch
          %201 = sbr.rel (%p199) target = $region44
        $region43: #{pb_mse_metric.1} parent=35 // pred_region
          %202 = dma.done [#allocation5], 32
        $region44: #{pb_mse_metric.1} parent=35 // pred_fallthru
          _
        %203 = sfence
        %p204 = scmp.lt.s32.totalorder %s17, 1
        %s205 = scalar_select %p204, %s17, 1
        %s206 = smul.addr %s205, 2
        %s207 = smul.addr %s206, 4
        %s208 = scalar_lea.vmem %s0, %s207
        %p209 = pneg %p38
        %p210 = pneg %p35
        %p211 = scmp.lt.s32.totalorder %s17, 1
        %s212 = scalar_select %p211, %s17, 1
        %s213 = smul.addr %s212, 4
        %s214 = scalar_lea.vmem %s1, %s213
        %p215 = pneg %p64
        %p216 = pneg %p61
        %p217 = pneg %p85
        %p218 = pneg %p82
        %p219 = pneg %p106
        %p220 = pneg %p103
        %p221 = pneg %p132
        %p222 = pneg %p129
        %p223 = scmp.lt.s32.totalorder %s17, 1
        %s224 = scalar_select %p223, %s17, 1
        %s225 = scalar_lea.vmem %s4, %s224
        %p226 = scmp.lt.s32.totalorder %s17, 1
        %s227 = scalar_select %p226, %s17, 1
        %s228 = smul.addr %s227, 2
        %s229 = smul.addr %s228, 4
        %s230 = scalar_lea.vmem %s0, %s229
        %p231 = scmp.lt.s32.totalorder %s17, 1
        %s232 = scalar_select %p231, %s17, 1
        %s233 = smul.addr %s232, 4
        %s234 = scalar_lea.vmem %s1, %s233
        %p235 = scmp.lt.s32.totalorder %s17, 1
        %s236 = scalar_select %p235, %s17, 1
        %s237 = scalar_lea.vmem %s4, %s236
        %v238 = vld [vmem:[%s230] sm:$0xff]
        %v240 = vcombine.high %v238, %v238
        %vm242 = vcmask 1043456
        %v243 = vsel %vm242, %v238, -inf
        %v244 = vsel %vm242, %v240, -inf
        %v245 = vmax.f32 %v243, %v244
        %246 = vmax.xlane.f32.xlu0 %v245
        %v247 = vpop.xlane.xlu0 %246
        %v248 = vlaneseq
        %v249 = vand.u32 %v248, 127
        %v250 = vadd.s32 %v249, 128
        %v253 = vunpack.c.l.s4 839922192
        %v254 = vunpack.c.0.s8 %v253
        %v255 = vlaneseq
        %v256 = vshrl.u32 %v255, 7
        %v257 = vsub.s32 %v254, %v256
        %v258 = vrot.slane %v247, %v257
        %vm260 = vcmp.eq.f32.partialorder %v238, %v258
        %v261 = vcombine.low %v249, %v250
        %v262 = vsel %vm260, %v261, 256
        %v263 = vcombine.high %v262, %v262
        %v264 = vsel %vm242, %v262, 2147483647
        %v265 = vsel %vm242, %v263, 2147483647
        %vm266 = vcmp.lt.s32.totalorder %v264, %v265
        %v267 = vsel %vm266, %v264, %v265
        %v268 = vand.u32 %v267, 65535
        %v269 = vshra.s32 %v267, 16
        %v270 = vcvt.s32.f32 %v268
        %v271 = vcvt.s32.f32 %v269
        %272 = vmin.xlane.f32.xlu0 %v271
        %v273 = vpop.xlane.xlu0 %272
        %vm274 = vcmp.eq.f32.partialorder %v271, %v273
        %v275 = vsel %vm274, %v270, inf
        %276 = vmin.xlane.f32.xlu0 %v275
        %v277 = vpop.xlane.xlu0 %276
        %v278 = vcvt.f32.s32 %v277
        %v279 = vcvt.f32.s32 %v273
        %v280 = vshll.u32 %v279, 16
        %v281 = vadd.s32 %v280, %v278
        %v282 = vshra.s32 %v281, 4
        %v283 = vcvt.s32.f32 %v282
        %v284 = vand.u32 %v281, 15
        %v285 = vcvt.s32.f32 %v284
        %s286 = smul.u32 %s17, 128
        %s287 = sld [smem:[#allocation4 + %s286]]
        %s288 = sadd.s32 %s286, 1
        %s289 = sld [smem:[#allocation4 + %s288]]
        %s290 = sld [smem:[#allocation2 + %s286]]
        %s291 = smul.f32 %s290, %s287
        %s292 = smul.f32 %s291, 0.0625
        %s293 = sld [smem:[#allocation2 + %s288]]
        %s294 = smul.f32 %s293, %s289
        %s295 = smul.f32 %s294, 0.0625
        %v296 = vstv %s292
        %v297 = vmul.f32 %v285, %v296
        %v298 = vstv %s295
        %v299 = vmul.f32 %v283, %v298
        %v300 = vld [vmem:[%s234] sm:$0xf]
        %v301 = vstv %s287
        %v302 = vmul.f32 %v300, %v301
        %v303 = vstv %s289
        %v304 = vmul.f32 %v300, %v303
        %v305 = vsub.f32 %v297, %v302
        %v306 = vmul.f32 %v305, %v305
        %v307 = vsub.f32 %v299, %v304
        %v308 = vmul.f32 %v307, %v307
        %310 = vrot.lane.b32.xlu0 %v308, 127
        %v311 = vpop.permute.xlu0 %310
        %v313 = vadd.f32 %v306, %v311
        %vm314 = vcmask 3072
        %v315 = vsel %vm314, %v313, 0.0
        %v316 = vrot.slane %v315, 4
        %v317 = vadd.f32 %v315, %v316
        %v318 = vrot.slane %v317, 2
        %v319 = vadd.f32 %v317, %v318
        %v320 = vrot.slane %v319, 1
        %v321 = vadd.f32 %v319, %v320
        %v322 = vmul.f32 %v321, 0.125
        %vm323 = vcmask 0
        %324 = vst.msk [vmem:[%s237] sm:$0x1] %vm323, %v322
        %p325 = scmp.lt.s32.totalorder %s17, 1
        %s326 = scalar_select %p325, %s17, 1
        %s327 = scalar_lea.vmem %s4, %s326
        // Predicated region
        $region45: #{pb_mse_metric.1} parent=35 // pred_check
          %p328 = pneg %p129
        $region46: #{pb_mse_metric.1} parent=35 // pred_check_branch
          %330 = sbr.rel (%p328) target = $region48
        $region47: #{pb_mse_metric.1} parent=35 // pred_region
          _
        $region48: #{pb_mse_metric.1} parent=35 // pred_fallthru
          _
      $region36: #{pb_mse_metric.1} parent=5 // pred_fallthru
        _
      %p331 = scmp.le.s32.totalorder 2, %s12
      // Predicated region
      $region49: #{pb_mse_metric.1} parent=5 // pred_check
        %p332 = pneg %p331
      $region50: #{pb_mse_metric.1} parent=5 // pred_check_branch
        %334 = sbr.rel (%p332) target = $region52
      $region51: #{pb_mse_metric.1} parent=5 // pred_region
        %s335 = ssub.s32 %s12, 2
        // Predicated region
        $region53: #{pb_mse_metric.1} parent=51 // pred_check
          %p336 = pneg %p135
        $region54: #{pb_mse_metric.1} parent=51 // pred_check_branch
          %338 = sbr.rel (%p336) target = $region56
        $region55: #{pb_mse_metric.1} parent=51 // pred_region
          %p339 = scmp.lt.s32.totalorder %s18, 1
          %s340 = scalar_select %p339, %s18, 1
          %s341 = scalar_lea.vmem %s4, %s340
        $region56: #{pb_mse_metric.1} parent=51 // pred_fallthru
          _
      $region52: #{pb_mse_metric.1} parent=5 // pred_fallthru
        _
    $region6: #{pb_mse_metric.1} parent=1 // loop_footer
      %s16 = sadd.s32 1, %s12
    $region7: #{pb_mse_metric.1} parent=1 // loop_footer_branch
      %11 = sbr.rel target = $region3
    $region8: #{pb_mse_metric.1} parent=1 // loop_exit
      _
    %342 = vsyncpa [#allocation3], 1
    %s343 = scalar_lea.sflag [#allocation3], 1
    %344 = vsyncpa %s343, 1
    %345 = vsyncpa [#allocation5], 1

</llo_original>
